<compile_context>
chip_gen: v7x
topology: tpu7x:2x2x1
jax: 0.10.0
libtpu: 0.0.40
codegen_flags: <defaults>
</compile_context>

<pallas_src>
import jax
import jax.numpy as jnp
from jax.experimental import pallas as pl
from jax.experimental.pallas import tpu as pltpu


def _round_up(x, m):
    return (x + m - 1) // m * m


# ---------------------------------------------------------------------------
# Kernel: per batch tile, row-gather the needed embedding rows via DMA and
# apply the folded FC, writing a lane-dense (1, TB) output tile.
# ---------------------------------------------------------------------------
def _cf_gather_kernel(uid_ref, bid_ref,          # scalar-prefetch ids (SMEM)
                      wu_ref, wb_ref, bias_ref,  # FC halves (VMEM), bias (SMEM)
                      u_hbm, b_hbm,              # embedding tables (HBM, pl.ANY)
                      out_ref,                   # (1, TB) lane-dense output tile
                      ubuf, bbuf, sem):          # VMEM gather bufs + DMA sems
    tb = out_ref.shape[1]
    base = pl.program_id(0) * tb

    # Phase 1: issue one row-DMA per batch element in this tile (user + book).
    @pl.loop(0, tb)
    def _issue(j):
        uid = uid_ref[base + j]
        bid = bid_ref[base + j]
        pltpu.make_async_copy(u_hbm.at[pl.ds(uid, 1)], ubuf.at[pl.ds(j, 1)],
                              sem.at[0]).start()
        pltpu.make_async_copy(b_hbm.at[pl.ds(bid, 1)], bbuf.at[pl.ds(j, 1)],
                              sem.at[1]).start()

    # Phase 2: drain.  Every copy on a given sem has the identical (1, E)
    # shape, so waiting once per issued copy fully drains it.
    @pl.loop(0, tb)
    def _drain(j):
        pltpu.make_async_copy(u_hbm.at[pl.ds(0, 1)], ubuf.at[pl.ds(0, 1)],
                              sem.at[0]).wait()
        pltpu.make_async_copy(b_hbm.at[pl.ds(0, 1)], bbuf.at[pl.ds(0, 1)],
                              sem.at[1]).wait()

    # Phase 3: folded concat+Linear.  Widen the gathered rows (native dtype)
    # in VMEM and contract E against each weight half -> lane-dense (1, TB).
    u = ubuf[...].astype(jnp.float32)
    b = bbuf[...].astype(jnp.float32)
    su = jnp.einsum('oe,te->ot', wu_ref[...], u,
                    preferred_element_type=jnp.float32)
    sb = jnp.einsum('oe,te->ot', wb_ref[...], b,
                    preferred_element_type=jnp.float32)
    out_ref[...] = (su + sb + bias_ref[0, 0]).astype(out_ref.dtype)


def collaborative_filtering_forward(user_ids, book_ids, user_table, book_table,
                                    fc_weight, fc_bias):
    """JAX/Pallas equivalent of CollaborativeFiltering.forward.

    user_ids, book_ids : (B,)     integer
    user_table         : (NU, E)  embedding table (native dtype)
    book_table         : (NB, E)  embedding table (native dtype)
    fc_weight          : (1, 2E)  nn.Linear weight
    fc_bias            : (1,)     nn.Linear bias
    returns            : (B,)     f32
    """
    B = user_ids.shape[0]
    NU, E = user_table.shape

    # Batch tile: lane-dense output tiles; small batches collapse to one step.
    if B <= 128:
        TB = _round_up(B, 8)
    else:
        TB = 128
    B_pad = _round_up(B, TB)

    # Padded lanes gather row 0 (always valid) and are sliced off at the end.
    uid = jnp.pad(user_ids.astype(jnp.int32), (0, B_pad - B))
    bid = jnp.pad(book_ids.astype(jnp.int32), (0, B_pad - B))

    # Fold the concat+Linear: split the weight into user/book halves once.
    wu = fc_weight[:, :E].astype(jnp.float32).reshape(1, E)
    wb = fc_weight[:, E:].astype(jnp.float32).reshape(1, E)
    bias = fc_bias.astype(jnp.float32).reshape(1, 1)

    grid_spec = pltpu.PrefetchScalarGridSpec(
        num_scalar_prefetch=2,                       # uid, bid -> SMEM
        grid=(B_pad // TB,),
        in_specs=[
            pl.BlockSpec((1, E), lambda i, u, b: (0, 0)),        # Wu (resident)
            pl.BlockSpec((1, E), lambda i, u, b: (0, 0)),        # Wb (resident)
            pl.BlockSpec(memory_space=pltpu.MemorySpace.SMEM),   # bias scalar
            pl.BlockSpec(memory_space=pl.ANY),                   # user table (HBM)
            pl.BlockSpec(memory_space=pl.ANY),                   # book table (HBM)
        ],
        out_specs=pl.BlockSpec((1, TB), lambda i, u, b: (0, i)),
        scratch_shapes=[
            pltpu.VMEM((TB, E), user_table.dtype),               # gathered user rows
            pltpu.VMEM((TB, E), book_table.dtype),               # gathered book rows
            pltpu.SemaphoreType.DMA((2,)),                       # user / book DMA sems
        ],
    )

    out = pl.pallas_call(
        _cf_gather_kernel,
        out_shape=jax.ShapeDtypeStruct((1, B_pad), jnp.float32),
        grid_spec=grid_spec,
        compiler_params=pltpu.CompilerParams(
            dimension_semantics=("parallel",)),
    )(uid, bid, wu, wb, bias, user_table, book_table)

    return out[0, :B]                                # .squeeze()


if __name__ == "__main__":
    # Small synthetic problem consistent with the module's constructor.
    num_users, num_books, embedding_dim = 64, 96, 32

    key = jax.random.PRNGKey(0)
    k_ut, k_bt, k_w, k_b = jax.random.split(key, 4)

    # nn.Embedding default init: N(0, 1).  nn.Linear default: U(-1/sqrt(in), +).
    user_table = jax.random.normal(k_ut, (num_users, embedding_dim), jnp.float32)
    book_table = jax.random.normal(k_bt, (num_books, embedding_dim), jnp.float32)
    bound = 1.0 / (2 * embedding_dim) ** 0.5
    fc_weight = jax.random.uniform(k_w, (1, 2 * embedding_dim), jnp.float32,
                                   -bound, bound)
    fc_bias = jax.random.uniform(k_b, (1,), jnp.float32, -bound, bound)

    def reference(uids, bids):
        cat = jnp.concatenate([user_table[uids], book_table[bids]], axis=1)
        return (cat @ fc_weight.T + fc_bias).squeeze()

    # batch=8 exercises the single-step (full-dim block) path,
    # batch=200 exercises the multi-tile 128-lane path with padded tail lanes.
    for batch in (8, 200):
        ku, ki = jax.random.split(jax.random.PRNGKey(batch))
        user_ids = jax.random.randint(ku, (batch,), 0, num_users, jnp.int32)
        book_ids = jax.random.randint(ki, (batch,), 0, num_books, jnp.int32)

        out = collaborative_filtering_forward(user_ids, book_ids, user_table,
                                              book_table, fc_weight, fc_bias)
        out = jax.block_until_ready(out)
        ref = reference(user_ids, book_ids)
        assert out.shape == (batch,)
        err = float(jnp.max(jnp.abs(out - ref)))
        assert jnp.allclose(out, ref, atol=1e-5, rtol=1e-5), err

    print("KERNEL_OK")
</pallas_src>

<mosaic_0001>
module attributes {stable_mosaic.version = 11 : i64} {
  func.func @_cf_gather_kernel(%arg0: i32, %arg1: memref<8xi32, #tpu.memory_space<smem>>, %arg2: memref<8xi32, #tpu.memory_space<smem>>, %arg3: memref<1x32xf32, #tpu.memory_space<vmem>>, %arg4: memref<1x32xf32, #tpu.memory_space<vmem>>, %arg5: memref<1x1xf32, #tpu.memory_space<smem>>, %arg6: memref<64x32xf32, #tpu.memory_space<any>>, %arg7: memref<96x32xf32, #tpu.memory_space<any>>, %arg8: memref<1x8xf32, #tpu.memory_space<vmem>>, %arg9: memref<8x32xf32, #tpu.memory_space<vmem>>, %arg10: memref<8x32xf32, #tpu.memory_space<vmem>>, %arg11: memref<2x!tpu.dma_semaphore, #tpu.memory_space<semaphore_mem>>) attributes {dimension_semantics = [#tpu.dimension_semantics<parallel>], iteration_bounds = array<i64: 1>, scalar_prefetch = 2 : i64, scratch_operands = 3 : i64, tpu.core_type = #tpu.core_type<tc>, window_params = [{pipeline_mode = #tpu.pipeline_mode<synchronous>, transform_indices = @transform_0, window_bounds = array<i64: 1, 32>}, {pipeline_mode = #tpu.pipeline_mode<synchronous>, transform_indices = @transform_1, window_bounds = array<i64: 1, 32>}, {transform_indices = @transform_2, window_bounds = array<i64: 1, 1>}, {}, {}, {transform_indices = @transform_5, window_bounds = array<i64: 1, 8>}]} {
    %c8_i32 = arith.constant 8 : i32
    %0 = arith.muli %arg0, %c8_i32 : i32
    %c0_i32 = arith.constant 0 : i32
    %c8_i32_0 = arith.constant 8 : i32
    %1 = arith.addi %c0_i32, %c8_i32_0 : i32
    %c1_i32 = arith.constant 1 : i32
    scf.for %arg12 = %c0_i32 to %1 step %c1_i32  : i32 {
      %c1_i32_17 = arith.constant 1 : i32
      %14 = arith.muli %arg12, %c1_i32_17 : i32
      %c0_i32_18 = arith.constant 0 : i32
      %15 = arith.addi %c0_i32_18, %14 : i32
      %16 = arith.addi %0, %15 : i32
      %17 = arith.index_cast %16 : i32 to index
      %18 = memref.load %arg1[%17] : memref<8xi32, #tpu.memory_space<smem>>
      %19 = arith.addi %0, %15 : i32
      %20 = arith.index_cast %19 : i32 to index
      %21 = memref.load %arg2[%20] : memref<8xi32, #tpu.memory_space<smem>>
      %c0_i32_19 = arith.constant 0 : i32
      %c0_i32_20 = arith.constant 0 : i32
      %22 = tpu.memref_slice %arg6[%18, %c0_i32_20] : memref<64x32xf32, #tpu.memory_space<any>> -> memref<1x32xf32, #tpu.memory_space<any>>
      %c0_i32_21 = arith.constant 0 : i32
      %23 = tpu.memref_slice %arg9[%15, %c0_i32_21] : memref<8x32xf32, #tpu.memory_space<vmem>> -> memref<1x32xf32, #tpu.memory_space<vmem>>
      %24 = tpu.memref_slice %arg11[%c0_i32_19] : memref<2x!tpu.dma_semaphore, #tpu.memory_space<semaphore_mem>> -> memref<1x!tpu.dma_semaphore, #tpu.memory_space<semaphore_mem>>
      %25 = tpu.memref_squeeze %24 : memref<1x!tpu.dma_semaphore, #tpu.memory_space<semaphore_mem>> -> memref<!tpu.dma_semaphore, #tpu.memory_space<semaphore_mem>>
      tpu.enqueue_dma source(%22 : memref<1x32xf32, #tpu.memory_space<any>>) target(%23 : memref<1x32xf32, #tpu.memory_space<vmem>>) target_semaphore(%25 : memref<!tpu.dma_semaphore, #tpu.memory_space<semaphore_mem>>)
      %c1_i32_22 = arith.constant 1 : i32
      %c0_i32_23 = arith.constant 0 : i32
      %26 = tpu.memref_slice %arg7[%21, %c0_i32_23] : memref<96x32xf32, #tpu.memory_space<any>> -> memref<1x32xf32, #tpu.memory_space<any>>
      %c0_i32_24 = arith.constant 0 : i32
      %27 = tpu.memref_slice %arg10[%15, %c0_i32_24] : memref<8x32xf32, #tpu.memory_space<vmem>> -> memref<1x32xf32, #tpu.memory_space<vmem>>
      %28 = tpu.memref_slice %arg11[%c1_i32_22] : memref<2x!tpu.dma_semaphore, #tpu.memory_space<semaphore_mem>> -> memref<1x!tpu.dma_semaphore, #tpu.memory_space<semaphore_mem>>
      %29 = tpu.memref_squeeze %28 : memref<1x!tpu.dma_semaphore, #tpu.memory_space<semaphore_mem>> -> memref<!tpu.dma_semaphore, #tpu.memory_space<semaphore_mem>>
      tpu.enqueue_dma source(%26 : memref<1x32xf32, #tpu.memory_space<any>>) target(%27 : memref<1x32xf32, #tpu.memory_space<vmem>>) target_semaphore(%29 : memref<!tpu.dma_semaphore, #tpu.memory_space<semaphore_mem>>)
    }
    %c8_i32_1 = arith.constant 8 : i32
    %c0_i32_2 = arith.constant 0 : i32
    %c8_i32_3 = arith.constant 8 : i32
    %2 = arith.addi %c0_i32_2, %c8_i32_3 : i32
    %c1_i32_4 = arith.constant 1 : i32
    scf.for %arg12 = %c0_i32_2 to %2 step %c1_i32_4  : i32 {
      %c0_i32_17 = arith.constant 0 : i32
      %c0_i32_18 = arith.constant 0 : i32
      %c0_i32_19 = arith.constant 0 : i32
      %14 = tpu.memref_slice %arg6[%c0_i32_18, %c0_i32_19] : memref<64x32xf32, #tpu.memory_space<any>> -> memref<1x32xf32, #tpu.memory_space<any>>
      %c0_i32_20 = arith.constant 0 : i32
      %c0_i32_21 = arith.constant 0 : i32
      %15 = tpu.memref_slice %arg9[%c0_i32_20, %c0_i32_21] : memref<8x32xf32, #tpu.memory_space<vmem>> -> memref<1x32xf32, #tpu.memory_space<vmem>>
      %16 = tpu.memref_slice %arg11[%c0_i32_17] : memref<2x!tpu.dma_semaphore, #tpu.memory_space<semaphore_mem>> -> memref<1x!tpu.dma_semaphore, #tpu.memory_space<semaphore_mem>>
      %17 = tpu.memref_squeeze %16 : memref<1x!tpu.dma_semaphore, #tpu.memory_space<semaphore_mem>> -> memref<!tpu.dma_semaphore, #tpu.memory_space<semaphore_mem>>
      tpu.wait_dma2 semaphore(%17 : memref<!tpu.dma_semaphore, #tpu.memory_space<semaphore_mem>>) src(%14 : memref<1x32xf32, #tpu.memory_space<any>>) dst(%15 : memref<1x32xf32, #tpu.memory_space<vmem>>)
      %c1_i32_22 = arith.constant 1 : i32
      %c0_i32_23 = arith.constant 0 : i32
      %c0_i32_24 = arith.constant 0 : i32
      %18 = tpu.memref_slice %arg7[%c0_i32_23, %c0_i32_24] : memref<96x32xf32, #tpu.memory_space<any>> -> memref<1x32xf32, #tpu.memory_space<any>>
      %c0_i32_25 = arith.constant 0 : i32
      %c0_i32_26 = arith.constant 0 : i32
      %19 = tpu.memref_slice %arg10[%c0_i32_25, %c0_i32_26] : memref<8x32xf32, #tpu.memory_space<vmem>> -> memref<1x32xf32, #tpu.memory_space<vmem>>
      %20 = tpu.memref_slice %arg11[%c1_i32_22] : memref<2x!tpu.dma_semaphore, #tpu.memory_space<semaphore_mem>> -> memref<1x!tpu.dma_semaphore, #tpu.memory_space<semaphore_mem>>
      %21 = tpu.memref_squeeze %20 : memref<1x!tpu.dma_semaphore, #tpu.memory_space<semaphore_mem>> -> memref<!tpu.dma_semaphore, #tpu.memory_space<semaphore_mem>>
      tpu.wait_dma2 semaphore(%21 : memref<!tpu.dma_semaphore, #tpu.memory_space<semaphore_mem>>) src(%18 : memref<1x32xf32, #tpu.memory_space<any>>) dst(%19 : memref<1x32xf32, #tpu.memory_space<vmem>>)
    }
    %c0 = arith.constant 0 : index
    %c0_5 = arith.constant 0 : index
    %3 = vector.load %arg9[%c0, %c0_5] : memref<8x32xf32, #tpu.memory_space<vmem>>, vector<8x32xf32>
    %c0_6 = arith.constant 0 : index
    %c0_7 = arith.constant 0 : index
    %4 = vector.load %arg10[%c0_6, %c0_7] : memref<8x32xf32, #tpu.memory_space<vmem>>, vector<8x32xf32>
    %c0_8 = arith.constant 0 : index
    %c0_9 = arith.constant 0 : index
    %5 = vector.load %arg3[%c0_8, %c0_9] : memref<1x32xf32, #tpu.memory_space<vmem>>, vector<1x32xf32>
    "tpu.trace_start"() <{level = 10 : i32, message = "oe,te->ot"}> : () -> ()
    %cst = arith.constant dense<0.000000e+00> : vector<1x8xf32>
    %6 = tpu.matmul %5, %3, %cst {dimension_numbers = #tpu.dot_dimension_numbers<[1], [1], [0], [0], [0, 0, 1, 0], [], []>} : vector<1x32xf32>, vector<8x32xf32>, vector<1x8xf32> -> vector<1x8xf32>
    "tpu.trace_stop"() : () -> ()
    %c0_10 = arith.constant 0 : index
    %c0_11 = arith.constant 0 : index
    %7 = vector.load %arg4[%c0_10, %c0_11] : memref<1x32xf32, #tpu.memory_space<vmem>>, vector<1x32xf32>
    "tpu.trace_start"() <{level = 10 : i32, message = "oe,te->ot"}> : () -> ()
    %cst_12 = arith.constant dense<0.000000e+00> : vector<1x8xf32>
    %8 = tpu.matmul %7, %4, %cst_12 {dimension_numbers = #tpu.dot_dimension_numbers<[1], [1], [0], [0], [0, 0, 1, 0], [], []>} : vector<1x32xf32>, vector<8x32xf32>, vector<1x8xf32> -> vector<1x8xf32>
    "tpu.trace_stop"() : () -> ()
    %9 = arith.addf %6, %8 : vector<1x8xf32>
    %c0_13 = arith.constant 0 : index
    %c0_14 = arith.constant 0 : index
    %10 = memref.load %arg5[%c0_13, %c0_14] : memref<1x1xf32, #tpu.memory_space<smem>>
    %11 = vector.broadcast %10 : f32 to vector<1x8xf32>
    %12 = arith.addf %9, %11 : vector<1x8xf32>
    %c0_15 = arith.constant 0 : index
    %c0_16 = arith.constant 0 : index
    %13 = vector.load %arg8[%c0_15, %c0_16] : memref<1x8xf32, #tpu.memory_space<vmem>>, vector<1x8xf32>
    tpu.vector_store %arg8[%c0_15, %c0_16], %12 {strides = array<i32>} : memref<1x8xf32, #tpu.memory_space<vmem>>, vector<1x8xf32>,
    return
  }
  func.func @transform_0(%arg0: i32, %arg1: memref<8xi32, #tpu.memory_space<smem>>, %arg2: memref<8xi32, #tpu.memory_space<smem>>) -> (i32, i32) {
    %c0_i32 = arith.constant 0 : i32
    %c0_i32_0 = arith.constant 0 : i32
    %c0_i32_1 = arith.constant 0 : i32
    return %c0_i32, %c0_i32_0 : i32, i32
  }
  func.func @transform_1(%arg0: i32, %arg1: memref<8xi32, #tpu.memory_space<smem>>, %arg2: memref<8xi32, #tpu.memory_space<smem>>) -> (i32, i32) {
    %c0_i32 = arith.constant 0 : i32
    %c0_i32_0 = arith.constant 0 : i32
    %c0_i32_1 = arith.constant 0 : i32
    return %c0_i32, %c0_i32_0 : i32, i32
  }
  func.func @transform_2(%arg0: i32, %arg1: memref<8xi32, #tpu.memory_space<smem>>, %arg2: memref<8xi32, #tpu.memory_space<smem>>) -> (i32, i32) {
    %c0_i32 = arith.constant 0 : i32
    %c0_i32_0 = arith.constant 0 : i32
    %c0_i32_1 = arith.constant 0 : i32
    return %c0_i32, %c0_i32_0 : i32, i32
  }
  func.func @transform_5(%arg0: i32, %arg1: memref<8xi32, #tpu.memory_space<smem>>, %arg2: memref<8xi32, #tpu.memory_space<smem>>) -> (i32, i32) {
    %c0_i32 = arith.constant 0 : i32
    %c0_i32_0 = arith.constant 0 : i32
    return %c0_i32, %arg0 : i32, i32
  }
}

</mosaic_0001>

<llo_original>
// kernel: tpu_custom_call.1
$region0: #{tpu_custom_call.1}
  #allocation0 [shape = 'u32[]', space=smem, size = 0x4, offset = 0x4, fixed_abs, tag = 'smem constant byte address 0x4 - core index']
  #allocation1 [shape = 'u32[144,128]{1,0:T(1,128)}', space=vmem, size = 0x12000, scoped, tag = 'internal scratch']
  #allocation2 [shape = 'f32[8,32]{1,0:T(8,128)}', space=vmem, size = 0x1000, scoped, tag = 'scratch operand']
  #allocation3 [shape = 'f32[8,32]{1,0:T(8,128)}', space=vmem, size = 0x1000, scoped, tag = 'scratch operand']
  #allocation4 [shape = 's32[2]{0}', space=sflag, size = 0x8, scoped, tag = 'scratch operand']
  #allocation5 [shape = 's32[1]{0}', space=sflag, size = 0x4, scoped, tag = 'scoped memory for tpu_custom_call.1']
  #allocation6 [shape = 'u8[512]{0}', space=smem, size = 0x200, scoped, tag = 'prefetched SMEM operand 0']
  #allocation7 [shape = 'u8[512]{0}', space=smem, size = 0x200, scoped, tag = 'prefetched SMEM operand 1']
  #allocation8 [shape = 'f32[1,1]{1,0:T(1,128)S(6)}', space=smem, size = 0x200, scoped, tag = 'scoped memory for tpu_custom_call.1']
  #allocation11 [shape = 's32[]', space=sflag, size = 0x4, offset = 0, fixed_abs, tag = 'sflag constant byte address 0x0 - dummy sync flag']
  #allocation12 [shape = 's32[]', space=sflag, size = 0x4, offset = 0, fixed_abs, tag = 'sflag constant byte address 0x0 - dummy sync flag']
  %s0 = inlined_call_operand.vmem [shape: s32[8], index: 0, kind: input, shape index: {}]
  %s1 = inlined_call_operand.vmem [shape: s32[8], index: 1, kind: input, shape index: {}]
  %s2 = inlined_call_operand.vmem [shape: f32[1,32], index: 2, kind: input, shape index: {}]
  %s3 = inlined_call_operand.vmem [shape: f32[1,32], index: 3, kind: input, shape index: {}]
  %s4 = inlined_call_operand.<no memory space> [shape: f32[1,1], index: 4, kind: input, shape index: {}]
  %s5 = inlined_call_operand.vmem [shape: f32[64,32], index: 5, kind: input, shape index: {}]
  %s6 = inlined_call_operand.vmem [shape: f32[96,32], index: 6, kind: input, shape index: {}]
  %s7 = inlined_call_operand.hbm [shape: f32[1,8], index: 7, kind: output, shape index: {}]
  %s8 = sld [smem:[#allocation0]]
  $region96: #{tpu_custom_call.1} parent=0
    _
  %s10 = ssub.s32 1, %s8
  %s11 = scalar_select 0, %s10, %s8
  %s12 = sshll.u32 %s0, 4
  %s13 = int_to_ptr.vmem [resolvable:$true] %s12
  %15 = dma.vmem_to_smem %s13, 16, [#allocation6], [#allocation5]
  %s16 = sshll.u32 %s1, 4
  %s17 = int_to_ptr.vmem [resolvable:$true] %s16
  %19 = dma.vmem_to_smem %s17, 16, [#allocation7], [#allocation5]
  %20 = sst [smem:[#allocation8]] %s4
  %21 = dma.done [#allocation5], 32
  %22 = sfence
  $region1: #{tpu_custom_call.1} parent=0
    #allocation9 [shape = 'u8[512]{0}', space=vmem, size = 0x400, scoped, tag = 'output window, operand 0, single buffered']
    #allocation10 [shape = 's32[1]{0}', space=sflag, size = 0x4, scoped, tag = 'scoped memory for tpu_custom_call.1']
    %23 = vsyncpa [#allocation10], 0
    // Predicated region
    $region2: #{tpu_custom_call.1} parent=1 // pred_check
      _
    $region3: #{tpu_custom_call.1} parent=1 // pred_check_branch
      %25 = sbr.rel (0) target = $region5
    $region4: #{tpu_custom_call.1} parent=1 // pred_region
      _
    $region5: #{tpu_custom_call.1} parent=1 // pred_fallthru
      _
    // Predicated region
    $region6: #{tpu_custom_call.1} parent=1 // pred_check
      _
    $region7: #{tpu_custom_call.1} parent=1 // pred_check_branch
      %27 = sbr.rel (0) target = $region9
    $region8: #{tpu_custom_call.1} parent=1 // pred_region
      _
    $region9: #{tpu_custom_call.1} parent=1 // pred_fallthru
      _
    // Predicated region
    $region10: #{tpu_custom_call.1} parent=1 // pred_check
      _
    $region11: #{tpu_custom_call.1} parent=1 // pred_check_branch
      %29 = sbr.rel (0) target = $region13
    $region12: #{tpu_custom_call.1} parent=1 // pred_region
      _
    $region13: #{tpu_custom_call.1} parent=1 // pred_fallthru
      _
    %s30 = smul.u32 0, 8
    loop: start=0, step=1, limit=8
    $region14: #{tpu_custom_call.1} parent=1 // loop_pre_header
      _
    $region15: #{tpu_custom_call.1} parent=1 // loop_header
      %s32 = sphi 0, %s36
      %p33 = scmp.ge.s32.totalorder %s32, 8
    $region16: #{tpu_custom_call.1} parent=1 // loop_header_branch
      %35 = sbr.rel (%p33) target = $region20
    $region17: #{tpu_custom_call.1} parent=1 // loop_body
      %s37 = sadd.s32 %s30, %s32
      %s38 = sld [smem:[#allocation6 + %s37]]
      %s39 = sld [smem:[#allocation7 + %s37]]
      %s40 = scalar_lea.vmem %s5, %s38
      %s41 = scalar_lea.vmem [#allocation2], %s32
      %p43 = scmp.lt.u32.totalorder 1, 8
      %p44 = pneg %p43
      // Predicated region
      $region21: #{tpu_custom_call.1} parent=17 // pred_check
        _
      $region22: #{tpu_custom_call.1} parent=17 // pred_check_branch
        %46 = sbr.rel (%p43) target = $region24
      $region23: #{tpu_custom_call.1} parent=17 // pred_region
        %s61 = sand.u32 1, 7
        %p62 = scmp.eq.s32.totalorder %s61, 0
        %p63 = pneg %p62
        // Predicated region
        $region36: #{tpu_custom_call.1} parent=23 // pred_check
          _
        $region37: #{tpu_custom_call.1} parent=23 // pred_check_branch
          %65 = sbr.rel (%p62) target = $region39
        $region38: #{tpu_custom_call.1} parent=23 // pred_region
          %s66 = sand.u32 1, 7
          %s67 = ssub.s32 1, %s66
          %s68 = scalar_lea.vmem %s40, %s67
          %s69 = ssub.s32 1, %s66
          %s70 = scalar_lea.vmem %s41, %s69 [#allocation2]
          %s71 = sshllo.u32 0, %s66
          loop: start=0, step=1, limit=1
          $region40: #{tpu_custom_call.1} parent=38 // loop_pre_header
            _
          $region41: #{tpu_custom_call.1} parent=38 // loop_header
            %s73 = sphi 0, %s77
            %p74 = scmp.ge.s32.totalorder %s73, 1
            %s78 = sphi %s68, %s68
            %s79 = sphi %s70, %s70
          $region42: #{tpu_custom_call.1} parent=38 // loop_header_branch
            %76 = sbr.rel (%p74) target = $region46
          $region43: #{tpu_custom_call.1} parent=38 // loop_body
            %v80 = vld [vmem:[%s78] sm:%s71]
            %81 = vst [vmem:[%s79] sm:%s71] %v80
          $region44: #{tpu_custom_call.1} parent=38 // loop_footer
            %s77 = sadd.s32 1, %s73
          $region45: #{tpu_custom_call.1} parent=38 // loop_footer_branch
            %72 = sbr.rel target = $region41
          $region46: #{tpu_custom_call.1} parent=38 // loop_exit
            _
        $region39: #{tpu_custom_call.1} parent=23 // pred_fallthru
          _
      $region24: #{tpu_custom_call.1} parent=17 // pred_fallthru
        _
      // Predicated region
      $region25: #{tpu_custom_call.1} parent=17 // pred_check
        %p47 = pneg %p43
      $region26: #{tpu_custom_call.1} parent=17 // pred_check_branch
        %49 = sbr.rel (%p47) target = $region28
      $region27: #{tpu_custom_call.1} parent=17 // pred_region
        %s50 = sshllo.u32 0, 1
        loop: start=0, step=1, limit=1
        $region29: #{tpu_custom_call.1} parent=27 // loop_pre_header
          _
        $region30: #{tpu_custom_call.1} parent=27 // loop_header
          %s52 = sphi 0, %s56
          %p53 = scmp.ge.s32.totalorder %s52, 1
          %s57 = sphi %s40, %s40
          %s58 = sphi %s41, %s41
        $region31: #{tpu_custom_call.1} parent=27 // loop_header_branch
          %55 = sbr.rel (%p53) target = $region35
        $region32: #{tpu_custom_call.1} parent=27 // loop_body
          %v59 = vld [vmem:[%s57] sm:%s50]
          %60 = vst [vmem:[%s58] sm:%s50] %v59
        $region33: #{tpu_custom_call.1} parent=27 // loop_footer
          %s56 = sadd.s32 1, %s52
        $region34: #{tpu_custom_call.1} parent=27 // loop_footer_branch
          %51 = sbr.rel target = $region30
        $region35: #{tpu_custom_call.1} parent=27 // loop_exit
          _
      $region28: #{tpu_custom_call.1} parent=17 // pred_fallthru
        _
      // Predicated region
      $region47: #{tpu_custom_call.1} parent=17 // pred_check
        _
      $region48: #{tpu_custom_call.1} parent=17 // pred_check_branch
        %84 = sbr.rel (0) target = $region50
      $region49: #{tpu_custom_call.1} parent=17 // pred_region
        %85 = vsyncadd [#allocation4], 16
      $region50: #{tpu_custom_call.1} parent=17 // pred_fallthru
        _
      %s86 = scalar_lea.vmem %s6, %s39
      %s87 = scalar_lea.vmem [#allocation3], %s32
      %s88 = scalar_lea.sflag [#allocation4], 1
      %p90 = scmp.lt.u32.totalorder 1, 8
      %p91 = pneg %p90
      // Predicated region
      $region51: #{tpu_custom_call.1} parent=17 // pred_check
        _
      $region52: #{tpu_custom_call.1} parent=17 // pred_check_branch
        %93 = sbr.rel (%p90) target = $region54
      $region53: #{tpu_custom_call.1} parent=17 // pred_region
        %s108 = sand.u32 1, 7
        %p109 = scmp.eq.s32.totalorder %s108, 0
        %p110 = pneg %p109
        // Predicated region
        $region66: #{tpu_custom_call.1} parent=53 // pred_check
          _
        $region67: #{tpu_custom_call.1} parent=53 // pred_check_branch
          %112 = sbr.rel (%p109) target = $region69
        $region68: #{tpu_custom_call.1} parent=53 // pred_region
          %s113 = sand.u32 1, 7
          %s114 = ssub.s32 1, %s113
          %s115 = scalar_lea.vmem %s86, %s114
          %s116 = ssub.s32 1, %s113
          %s117 = scalar_lea.vmem %s87, %s116 [#allocation3]
          %s118 = sshllo.u32 0, %s113
          loop: start=0, step=1, limit=1
          $region70: #{tpu_custom_call.1} parent=68 // loop_pre_header
            _
          $region71: #{tpu_custom_call.1} parent=68 // loop_header
            %s120 = sphi 0, %s124
            %p121 = scmp.ge.s32.totalorder %s120, 1
            %s125 = sphi %s115, %s115
            %s126 = sphi %s117, %s117
          $region72: #{tpu_custom_call.1} parent=68 // loop_header_branch
            %123 = sbr.rel (%p121) target = $region76
          $region73: #{tpu_custom_call.1} parent=68 // loop_body
            %v127 = vld [vmem:[%s125] sm:%s118]
            %128 = vst [vmem:[%s126] sm:%s118] %v127
          $region74: #{tpu_custom_call.1} parent=68 // loop_footer
            %s124 = sadd.s32 1, %s120
          $region75: #{tpu_custom_call.1} parent=68 // loop_footer_branch
            %119 = sbr.rel target = $region71
          $region76: #{tpu_custom_call.1} parent=68 // loop_exit
            _
        $region69: #{tpu_custom_call.1} parent=53 // pred_fallthru
          _
      $region54: #{tpu_custom_call.1} parent=17 // pred_fallthru
        _
      // Predicated region
      $region55: #{tpu_custom_call.1} parent=17 // pred_check
        %p94 = pneg %p90
      $region56: #{tpu_custom_call.1} parent=17 // pred_check_branch
        %96 = sbr.rel (%p94) target = $region58
      $region57: #{tpu_custom_call.1} parent=17 // pred_region
        %s97 = sshllo.u32 0, 1
        loop: start=0, step=1, limit=1
        $region59: #{tpu_custom_call.1} parent=57 // loop_pre_header
          _
        $region60: #{tpu_custom_call.1} parent=57 // loop_header
          %s99 = sphi 0, %s103
          %p100 = scmp.ge.s32.totalorder %s99, 1
          %s104 = sphi %s86, %s86
          %s105 = sphi %s87, %s87
        $region61: #{tpu_custom_call.1} parent=57 // loop_header_branch
          %102 = sbr.rel (%p100) target = $region65
        $region62: #{tpu_custom_call.1} parent=57 // loop_body
          %v106 = vld [vmem:[%s104] sm:%s97]
          %107 = vst [vmem:[%s105] sm:%s97] %v106
        $region63: #{tpu_custom_call.1} parent=57 // loop_footer
          %s103 = sadd.s32 1, %s99
        $region64: #{tpu_custom_call.1} parent=57 // loop_footer_branch
          %98 = sbr.rel target = $region60
        $region65: #{tpu_custom_call.1} parent=57 // loop_exit
          _
      $region58: #{tpu_custom_call.1} parent=17 // pred_fallthru
        _
      // Predicated region
      $region77: #{tpu_custom_call.1} parent=17 // pred_check
        _
      $region78: #{tpu_custom_call.1} parent=17 // pred_check_branch
        %131 = sbr.rel (0) target = $region80
      $region79: #{tpu_custom_call.1} parent=17 // pred_region
        %132 = vsyncadd %s88, 16
      $region80: #{tpu_custom_call.1} parent=17 // pred_fallthru
        _
    $region18: #{tpu_custom_call.1} parent=1 // loop_footer
      %s36 = sadd.s32 1, %s32
    $region19: #{tpu_custom_call.1} parent=1 // loop_footer_branch
      %31 = sbr.rel target = $region15
    $region20: #{tpu_custom_call.1} parent=1 // loop_exit
      _
    loop: start=0, step=1, limit=8
    $region81: #{tpu_custom_call.1} parent=1 // loop_pre_header
      _
    $region82: #{tpu_custom_call.1} parent=1 // loop_header
      %s134 = sphi 0, %s138
      %p135 = scmp.ge.s32.totalorder %s134, 8
    $region83: #{tpu_custom_call.1} parent=1 // loop_header_branch
      %137 = sbr.rel (%p135) target = $region87
    $region84: #{tpu_custom_call.1} parent=1 // loop_body
      %s139 = smul.u32 1, 1
      %s140 = sshll.u32 %s139, 4
      %141 = dma.done [#allocation4], %s140
      %s142 = scalar_lea.sflag [#allocation4], 1
      %s143 = sshll.u32 %s139, 4
      %144 = dma.done %s142, %s143
    $region85: #{tpu_custom_call.1} parent=1 // loop_footer
      %s138 = sadd.s32 1, %s134
    $region86: #{tpu_custom_call.1} parent=1 // loop_footer_branch
      %133 = sbr.rel target = $region82
    $region87: #{tpu_custom_call.1} parent=1 // loop_exit
      _
    %v145 = vld [vmem:[#allocation2] sm:$0xff]
    %v146 = vld [vmem:[#allocation3] sm:$0xff]
    %v147 = vld [vmem:[%s2] sm:$0x1]
    %v148 = vld [vmem:[%s3] sm:$0x1]
    %vm149 = vcmask 261120
    %v151 = vsel %vm149, %v148, 0
    %v154 = vsel %vm149, %v146, 0
    %156 = vmatprep.subr.mxu0 0.0
    %157 = vmatpush1.xpose.msra.mxu0 %v154
    %158 = vmatprep.subr.mxu0 0.0
    %159 = vmatpush1.xpose.msra.mxu0 0.0
    %160 = vmatprep.subr.mxu0 0.0
    %161 = vmatpush1.xpose.msra.mxu0 0.0
    %162 = vmatprep.subr.mxu0 0.0
    %163 = vmatpush1.xpose.msra.mxu0 0.0
    %164 = vmatprep.subr.mxu0 0.0
    %165 = vmatpush1.xpose.msra.mxu0 0.0
    %166 = vmatprep.subr.mxu0 0.0
    %167 = vmatpush1.xpose.msra.mxu0 0.0
    %168 = vmatprep.subr.mxu0 0.0
    %169 = vmatpush1.xpose.msra.mxu0 0.0
    %170 = vmatprep.subr.mxu0 0.0
    %171 = vmatpush1.xpose.msra.mxu0 0.0
    %172 = vmatprep.subr.mxu0 0.0
    %173 = vmatpush1.xpose.msra.mxu0 0.0
    %174 = vmatprep.subr.mxu0 0.0
    %175 = vmatpush1.xpose.msra.mxu0 0.0
    %176 = vmatprep.subr.mxu0 0.0
    %177 = vmatpush1.xpose.msra.mxu0 0.0
    %178 = vmatprep.subr.mxu0 0.0
    %179 = vmatpush1.xpose.msra.mxu0 0.0
    %180 = vmatprep.subr.mxu0 0.0
    %181 = vmatpush1.xpose.msra.mxu0 0.0
    %182 = vmatprep.subr.mxu0 0.0
    %183 = vmatpush1.xpose.msra.mxu0 0.0
    %184 = vmatprep.subr.mxu0 0.0
    %185 = vmatpush1.xpose.msra.mxu0 0.0
    %186 = vmatprep.subr.mxu0 0.0
    %187 = vmatpush1.xpose.msra.mxu0 0.0
    %188 = vmatprep.subr.mxu0 0.0
    %189 = vmatpush1.xpose.msra.mxu0 0.0
    %190 = vmatprep.subr.mxu0 0.0
    %191 = vmatpush1.xpose.msra.mxu0 0.0
    %192 = vmatprep.subr.mxu0 0.0
    %193 = vmatpush1.xpose.msra.mxu0 0.0
    %194 = vmatprep.subr.mxu0 0.0
    %195 = vmatpush1.xpose.msra.mxu0 0.0
    %196 = vmatprep.subr.mxu0 0.0
    %197 = vmatpush1.xpose.msra.mxu0 0.0
    %198 = vmatprep.subr.mxu0 0.0
    %199 = vmatpush1.xpose.msra.mxu0 0.0
    %200 = vmatprep.subr.mxu0 0.0
    %201 = vmatpush1.xpose.msra.mxu0 0.0
    %202 = vmatprep.subr.mxu0 0.0
    %203 = vmatpush1.xpose.msra.mxu0 0.0
    %204 = vmatprep.subr.mxu0 0.0
    %205 = vmatpush1.xpose.msra.mxu0 0.0
    %206 = vmatprep.subr.mxu0 0.0
    %207 = vmatpush1.xpose.msra.mxu0 0.0
    %208 = vmatprep.subr.mxu0 0.0
    %209 = vmatpush1.xpose.msra.mxu0 0.0
    %210 = vmatprep.subr.mxu0 0.0
    %211 = vmatpush1.xpose.msra.mxu0 0.0
    %212 = vmatprep.subr.mxu0 0.0
    %213 = vmatpush1.xpose.msra.mxu0 0.0
    %214 = vmatprep.subr.mxu0 0.0
    %215 = vmatpush1.xpose.msra.mxu0 0.0
    %216 = vmatprep.subr.mxu0 0.0
    %217 = vmatpush1.xpose.msra.mxu0 0.0
    %218 = vmatprep.subr.mxu0 0.0
    %219 = vmatpush1.xpose.msra.mxu0 0.0
    %220 = vmatprep.mubr.f32.mxu0 0.0
    %221 = vmatmul.mubr.f32.gmra.mrb[0].mxu0 %v151
    %v222 = vpop.f32.mrb[0].mxu0
    %v223 = vadd.f32 0.0, %v222
    %v224 = vpop.f32.mrb[0].mxu0
    %225 = vdwg.mxu0
    %v227 = vsel %vm149, %v147, 0
    %v230 = vsel %vm149, %v145, 0
    %232 = vmatprep.subr.mxu0 0.0
    %233 = vmatpush1.xpose.msra.mxu0 %v230
    %234 = vmatprep.subr.mxu0 0.0
    %235 = vmatpush1.xpose.msra.mxu0 0.0
    %236 = vmatprep.subr.mxu0 0.0
    %237 = vmatpush1.xpose.msra.mxu0 0.0
    %238 = vmatprep.subr.mxu0 0.0
    %239 = vmatpush1.xpose.msra.mxu0 0.0
    %240 = vmatprep.subr.mxu0 0.0
    %241 = vmatpush1.xpose.msra.mxu0 0.0
    %242 = vmatprep.subr.mxu0 0.0
    %243 = vmatpush1.xpose.msra.mxu0 0.0
    %244 = vmatprep.subr.mxu0 0.0
    %245 = vmatpush1.xpose.msra.mxu0 0.0
    %246 = vmatprep.subr.mxu0 0.0
    %247 = vmatpush1.xpose.msra.mxu0 0.0
    %248 = vmatprep.subr.mxu0 0.0
    %249 = vmatpush1.xpose.msra.mxu0 0.0
    %250 = vmatprep.subr.mxu0 0.0
    %251 = vmatpush1.xpose.msra.mxu0 0.0
    %252 = vmatprep.subr.mxu0 0.0
    %253 = vmatpush1.xpose.msra.mxu0 0.0
    %254 = vmatprep.subr.mxu0 0.0
    %255 = vmatpush1.xpose.msra.mxu0 0.0
    %256 = vmatprep.subr.mxu0 0.0
    %257 = vmatpush1.xpose.msra.mxu0 0.0
    %258 = vmatprep.subr.mxu0 0.0
    %259 = vmatpush1.xpose.msra.mxu0 0.0
    %260 = vmatprep.subr.mxu0 0.0
    %261 = vmatpush1.xpose.msra.mxu0 0.0
    %262 = vmatprep.subr.mxu0 0.0
    %263 = vmatpush1.xpose.msra.mxu0 0.0
    %264 = vmatprep.subr.mxu0 0.0
    %265 = vmatpush1.xpose.msra.mxu0 0.0
    %266 = vmatprep.subr.mxu0 0.0
    %267 = vmatpush1.xpose.msra.mxu0 0.0
    %268 = vmatprep.subr.mxu0 0.0
    %269 = vmatpush1.xpose.msra.mxu0 0.0
    %270 = vmatprep.subr.mxu0 0.0
    %271 = vmatpush1.xpose.msra.mxu0 0.0
    %272 = vmatprep.subr.mxu0 0.0
    %273 = vmatpush1.xpose.msra.mxu0 0.0
    %274 = vmatprep.subr.mxu0 0.0
    %275 = vmatpush1.xpose.msra.mxu0 0.0
    %276 = vmatprep.subr.mxu0 0.0
    %277 = vmatpush1.xpose.msra.mxu0 0.0
    %278 = vmatprep.subr.mxu0 0.0
    %279 = vmatpush1.xpose.msra.mxu0 0.0
    %280 = vmatprep.subr.mxu0 0.0
    %281 = vmatpush1.xpose.msra.mxu0 0.0
    %282 = vmatprep.subr.mxu0 0.0
    %283 = vmatpush1.xpose.msra.mxu0 0.0
    %284 = vmatprep.subr.mxu0 0.0
    %285 = vmatpush1.xpose.msra.mxu0 0.0
    %286 = vmatprep.subr.mxu0 0.0
    %287 = vmatpush1.xpose.msra.mxu0 0.0
    %288 = vmatprep.subr.mxu0 0.0
    %289 = vmatpush1.xpose.msra.mxu0 0.0
    %290 = vmatprep.subr.mxu0 0.0
    %291 = vmatpush1.xpose.msra.mxu0 0.0
    %292 = vmatprep.subr.mxu0 0.0
    %293 = vmatpush1.xpose.msra.mxu0 0.0
    %294 = vmatprep.subr.mxu0 0.0
    %295 = vmatpush1.xpose.msra.mxu0 0.0
    %296 = vmatprep.mubr.f32.mxu0 0.0
    %297 = vmatmul.mubr.f32.gmra.mrb[0].mxu0 %v227
    %v298 = vpop.f32.mrb[0].mxu0
    %v299 = vadd.f32 %v223, %v298
    %v300 = vpop.f32.mrb[0].mxu0
    %301 = vdwg.mxu0
    %s302 = sld [smem:[#allocation8]]
    %v303 = vstv %s302
    %v304 = vadd.f32 %v299, %v303
    %vm305 = vcmask 57344
    %306 = vst.msk [vmem:[#allocation9] sm:$0x1] %vm305, %v304
    // Predicated region
    $region88: #{tpu_custom_call.1} parent=1 // pred_check
      _
    $region89: #{tpu_custom_call.1} parent=1 // pred_check_branch
      %308 = sbr.rel (0) target = $region91
    $region90: #{tpu_custom_call.1} parent=1 // pred_region
      %s310 = ssub.s32 16, 16
      %311 = vsyncadd [#allocation10], %s310
      %s313 = sshll.u32 [#allocation9], 4
      %s314 = int_to_ptr.vmem [resolvable:$true] %s313
      %316 = dma.vmem_to_hbm [thread:$0]  %s314, 16, %s7, [#allocation10]
    $region91: #{tpu_custom_call.1} parent=1 // pred_fallthru
      _
    // Predicated region
    $region92: #{tpu_custom_call.1} parent=1 // pred_check
      _
    $region93: #{tpu_custom_call.1} parent=1 // pred_check_branch
      %318 = sbr.rel (0) target = $region95
    $region94: #{tpu_custom_call.1} parent=1 // pred_region
      %319 = dma.done [#allocation10], 16
    $region95: #{tpu_custom_call.1} parent=1 // pred_fallthru
      _
    %320 = vsyncpa [#allocation10], 1
  %321 = vsyncmov [#allocation4]
  %s322 = vpop.sfrf %321
  %p323 = scmp.eq.s32.totalorder %s322, 0
  %p324 = pneg %p323
  %326 = shalt.err (%p324)
  %s327 = scalar_lea.sflag [#allocation4], 1
  %328 = vsyncmov %s327
  %s329 = vpop.sfrf %328
  %p330 = scmp.eq.s32.totalorder %s329, 0
  %p331 = pneg %p330
  %333 = shalt.err (%p331)

</llo_original>
